<compile_context>
chip_gen: v5e
topology: v5e:2x2
jax: 0.10.0
libtpu: 0.0.40
codegen_flags: <defaults>
</compile_context>

<pallas_src>
import jax
import jax.numpy as jnp
from jax.experimental import pallas as pl
from jax.experimental.pallas import tpu as pltpu

_LANES = 128
_BLOCK_TARGET_BYTES = 8 << 20      # ~8 MiB blocks amortize per-step overhead on all gens
_BLOCK_MIN_BYTES = 2 << 20         # never shrink below this when splitting for megacore
_MEGACORE_SPLIT_BYTES = 12 << 20   # only force >= _TARGET_STEPS steps above this slab size
_TARGET_STEPS = 6                  # >= 3 steps per v7x TensorCore -> per-core pipelining
_VMEM_CAP_BYTES = 56 << 20         # stay under v7x's 64 MiB physical VMEM (scratch headroom)


def _round_up(v: int, m: int) -> int:
    return ((v + m - 1) // m) * m


def _round_down(v: int, m: int) -> int:
    return (v // m) * m


def _hswish_kernel(x_ref, o_ref):
    # hard-swish: x * relu6(x + 3) / 6.  Compute in f32 (free — HBM-bound) and
    # cast back to the output dtype.
    x = x_ref[...].astype(jnp.float32)
    o_ref[...] = (x * jnp.clip(x + 3.0, 0.0, 6.0) / 6.0).astype(o_ref.dtype)


def _hswish_jnp(x: jax.Array) -> jax.Array:
    # Plain-XLA fallback for ragged sizes: already runs at the HBM roofline
    # with exactly 2N bytes of traffic.
    xf = x.astype(jnp.float32)
    return (xf * jnp.clip(xf + 3.0, 0.0, 6.0) / 6.0).astype(x.dtype)


def hswish(x: jax.Array, *, tile_rows: int | None = None) -> jax.Array:
    """Elementwise hard-swish matching PyTorch's x * F.relu6(x + 3) / 6."""
    orig_shape = x.shape
    dtype = x.dtype
    n = x.size
    if n == 0:
        return x

    itemsize = jnp.dtype(dtype).itemsize
    sublanes = max(8, 32 // itemsize)          # 8 for f32, 16 for bf16, 32 for int8
    bytes_per_row = _LANES * itemsize

    if n % _LANES != 0:
        # Ragged element count: pad->kernel->slice would move ~3x the bytes.
        return _hswish_jnp(x)

    rows = n // _LANES
    slab = x.reshape(rows, _LANES)             # contiguous reshape, no HBM copy
    slab_bytes = rows * bytes_per_row

    # --- block selection (sized in bytes) -----------------------------------
    max_tr = max(sublanes, _round_down(_BLOCK_TARGET_BYTES // bytes_per_row, sublanes))
    tr = min(rows, max_tr)

    if slab_bytes > _MEGACORE_SPLIT_BYTES:
        # Large slab: guarantee >= _TARGET_STEPS grid steps so v7x megacore gets
        # >= 2-3 steps per TensorCore (restores per-core double-buffering), but
        # keep each block >= _BLOCK_MIN_BYTES so step overhead stays amortized.
        min_tr = max(sublanes, _round_down(_BLOCK_MIN_BYTES // bytes_per_row, sublanes))
        split_tr = _round_up(pl.cdiv(rows, _TARGET_STEPS), sublanes)
        tr = min(tr, max(min_tr, split_tr))

    if tile_rows is not None:                  # explicit override (used in tests)
        tr = min(rows, max(sublanes, _round_down(tile_rows, sublanes)))

    if tr < rows:
        # Multi-block: block rows must be sublane-aligned ((8,128)/(16,128) rule).
        tr = max(sublanes, _round_down(tr, sublanes))
    # (tr == rows -> single block equal to the full array dims: always legal.)

    grid = (pl.cdiv(rows, tr),)   # partial tail block is masked by Pallas (elementwise-safe)

    block_bytes = tr * bytes_per_row
    # in + out, double-buffered, plus headroom; capped below v7x physical VMEM.
    vmem_limit = min(max(4 * block_bytes + (4 << 20), 16 << 20), _VMEM_CAP_BYTES)

    out = pl.pallas_call(
        _hswish_kernel,
        out_shape=jax.ShapeDtypeStruct((rows, _LANES), dtype),
        grid_spec=pltpu.PrefetchScalarGridSpec(
            num_scalar_prefetch=0,
            grid=grid,
            in_specs=[pl.BlockSpec((tr, _LANES), lambda i: (i, 0))],
            out_specs=pl.BlockSpec((tr, _LANES), lambda i: (i, 0)),
        ),
        compiler_params=pltpu.CompilerParams(
            dimension_semantics=("parallel",),
            vmem_limit_bytes=vmem_limit,
        ),
    )(slab)

    return out.reshape(orig_shape)


def hswish_ref(x):
    # PyTorch semantics: x * F.relu6(x + 3) / 6
    return x * jnp.clip(x + 3.0, 0.0, 6.0) / 6.0


if __name__ == "__main__":
    key = jax.random.PRNGKey(0)

    # NCHW like the PyTorch module; 128-aligned fast path, single block.
    x = jax.random.normal(key, (2, 4, 16, 16), dtype=jnp.float32) * 4.0
    y = hswish(x)
    jax.block_until_ready(y)
    assert y.shape == x.shape and y.dtype == x.dtype
    assert jnp.allclose(y, hswish_ref(x), atol=1e-6, rtol=1e-5), "f32 aligned mismatch"

    # Odd element count: exercises the plain-jnp ragged fallback.
    x2 = jax.random.normal(jax.random.PRNGKey(1), (3, 5, 7, 11), dtype=jnp.float32) * 4.0
    y2 = hswish(x2)
    jax.block_until_ready(y2)
    assert y2.shape == x2.shape
    assert jnp.allclose(y2, hswish_ref(x2), atol=1e-6, rtol=1e-5), "ragged fallback mismatch"

    # rows (40) not a multiple of the tile (16): masked partial tail block.
    x3 = jax.random.normal(jax.random.PRNGKey(2), (2, 5, 16, 32), dtype=jnp.float32) * 4.0
    y3 = hswish(x3, tile_rows=16)
    jax.block_until_ready(y3)
    assert jnp.allclose(y3, hswish_ref(x3), atol=1e-6, rtol=1e-5), "partial block mismatch"

    # bf16: 128-aligned but rows (24) not a multiple of the bf16 sublane pack (16)
    # -> stays on the zero-copy fast path as a single full-extent block.
    xb = (jax.random.normal(jax.random.PRNGKey(3), (3, 8, 128), dtype=jnp.float32) * 4.0
          ).astype(jnp.bfloat16)
    yb = hswish(xb)
    jax.block_until_ready(yb)
    assert yb.dtype == jnp.bfloat16
    assert jnp.allclose(yb.astype(jnp.float32),
                        hswish_ref(xb.astype(jnp.float32)),
                        atol=5e-2, rtol=5e-2), "bf16 mismatch"

    # Medium f32 slab (16 MiB): exercises the natural multi-step split (~6 steps).
    x4 = jax.random.normal(jax.random.PRNGKey(4), (4, 64, 128, 128), dtype=jnp.float32) * 4.0
    y4 = hswish(x4)
    jax.block_until_ready(y4)
    assert jnp.allclose(y4, hswish_ref(x4), atol=1e-6, rtol=1e-5), "multi-step mismatch"

    print("KERNEL_OK")
</pallas_src>

<mosaic_0001>
module attributes {stable_mosaic.version = 11 : i64} {
  func.func @_hswish_kernel(%arg0: i32, %arg1: memref<16x128xf32, #tpu.memory_space<vmem>>, %arg2: memref<16x128xf32, #tpu.memory_space<vmem>>) attributes {dimension_semantics = [#tpu.dimension_semantics<parallel>], iteration_bounds = array<i64: 1>, scalar_prefetch = 0 : i64, scratch_operands = 0 : i64, tpu.core_type = #tpu.core_type<tc>, window_params = [{transform_indices = @transform_0, window_bounds = array<i64: 16, 128>}, {transform_indices = @transform_1, window_bounds = array<i64: 16, 128>}]} {
    %c0 = arith.constant 0 : index
    %c0_0 = arith.constant 0 : index
    %0 = vector.load %arg1[%c0, %c0_0] : memref<16x128xf32, #tpu.memory_space<vmem>>, vector<16x128xf32>
    %cst = arith.constant 3.000000e+00 : f32
    %1 = vector.broadcast %cst : f32 to vector<16x128xf32>
    %2 = arith.addf %0, %1 : vector<16x128xf32>
    %cst_1 = arith.constant 0.000000e+00 : f32
    %cst_2 = arith.constant 6.000000e+00 : f32
    %3 = vector.broadcast %cst_1 : f32 to vector<16x128xf32>
    %4 = arith.maximumf %3, %2 : vector<16x128xf32>
    %5 = vector.broadcast %cst_2 : f32 to vector<16x128xf32>
    %6 = arith.minimumf %5, %4 : vector<16x128xf32>
    %7 = arith.mulf %0, %6 : vector<16x128xf32>
    %cst_3 = arith.constant 6.000000e+00 : f32
    %8 = vector.broadcast %cst_3 : f32 to vector<16x128xf32>
    %9 = arith.divf %7, %8 : vector<16x128xf32>
    %c0_4 = arith.constant 0 : index
    %c0_5 = arith.constant 0 : index
    %10 = vector.load %arg2[%c0_4, %c0_5] : memref<16x128xf32, #tpu.memory_space<vmem>>, vector<16x128xf32>
    tpu.vector_store %arg2[%c0_4, %c0_5], %9 {strides = array<i32>} : memref<16x128xf32, #tpu.memory_space<vmem>>, vector<16x128xf32>,
    return
  }
  func.func @transform_0(%arg0: i32) -> (i32, i32) {
    %c0_i32 = arith.constant 0 : i32
    %c0_i32_0 = arith.constant 0 : i32
    return %arg0, %c0_i32 : i32, i32
  }
  func.func @transform_1(%arg0: i32) -> (i32, i32) {
    %c0_i32 = arith.constant 0 : i32
    %c0_i32_0 = arith.constant 0 : i32
    return %arg0, %c0_i32 : i32, i32
  }
}

</mosaic_0001>

<llo_original>
// kernel: tpu_custom_call.1
$region0: #{tpu_custom_call.1}
  #allocation0 [shape = 'u32[]', space=smem, size = 0x4, offset = 0x4, fixed_abs, tag = 'smem constant byte address 0x4 - core index']
  #allocation1 [shape = 'u32[72,128]{1,0:T(1,128)}', space=vmem, size = 0x9000, scoped, tag = 'internal scratch']
  %s0 = inlined_call_operand.hbm [shape: f32[16,128], index: 0, kind: input, shape index: {}]
  %s1 = inlined_call_operand.hbm [shape: f32[16,128], index: 1, kind: output, shape index: {}]
  %s2 = sld [smem:[#allocation0]]
  $region18: #{tpu_custom_call.1} parent=0
    _
  %s4 = ssub.s32 1, %s2
  %s5 = scalar_select 0, %s4, %s2
  $region1: #{tpu_custom_call.1} parent=0
    #allocation2 [shape = 'u8[8192]{0}', space=vmem, size = 0x2000, scoped, tag = 'input window, operand 0, single buffered']
    #allocation3 [shape = 's32[1]{0}', space=sflag, size = 0x4, scoped, tag = 'scoped memory for tpu_custom_call.1']
    #allocation4 [shape = 's32[1]{0}', space=sflag, size = 0x4, scoped, tag = 'scoped memory for tpu_custom_call.1']
    #allocation5 [shape = 'u8[8192]{0}', space=vmem, size = 0x2000, scoped, tag = 'output window, operand 0, single buffered']
    %6 = vsyncpa [#allocation3], 0
    %7 = vsyncpa [#allocation4], 0
    // Predicated region
    $region2: #{tpu_custom_call.1} parent=1 // pred_check
      _
    $region3: #{tpu_custom_call.1} parent=1 // pred_check_branch
      %9 = sbr.rel (0) target = $region5
    $region4: #{tpu_custom_call.1} parent=1 // pred_region
      %11 = vsyncadd [#allocation3], 0
      %s12 = sshll.u32 %s0, 4
      %s13 = int_to_ptr.hbm [resolvable:$true] %s12
      %s14 = sshll.u32 [#allocation2], 4
      %s15 = int_to_ptr.vmem [resolvable:$true] %s14
      %20 = dma.hbm_to_vmem [thread:$0]  %s13, 256, %s15, [#allocation3], 128, 128, 8
    $region5: #{tpu_custom_call.1} parent=1 // pred_fallthru
      _
    // Predicated region
    $region6: #{tpu_custom_call.1} parent=1 // pred_check
      _
    $region7: #{tpu_custom_call.1} parent=1 // pred_check_branch
      %22 = sbr.rel (0) target = $region9
    $region8: #{tpu_custom_call.1} parent=1 // pred_region
      %24 = dma.done [#allocation3], 256
    $region9: #{tpu_custom_call.1} parent=1 // pred_fallthru
      _
    %v25 = vld [vmem:[#allocation2] sm:$0xff]
    %v26 = vld [vmem:[#allocation2 + $0x8] sm:$0xff]
    %v27 = vadd.f32 %v25, 3.0
    %v28 = vadd.f32 %v26, 3.0
    %v29 = vmax.f32 %v27, 0.0
    %v30 = vmax.f32 %v28, 0.0
    %v31 = vmin.f32 %v29, 6.0
    %v32 = vmin.f32 %v30, 6.0
    %v33 = vmul.f32 %v25, %v31
    %v34 = vmul.f32 %v26, %v32
    %v35 = vrcp.pop 6.0
    %v36 = vmul.f32 6.0, %v35
    %v37 = vsub.f32 1.0, %v36
    %v38 = vmul.f32 %v35, %v37
    %v39 = vadd.f32 %v35, %v38
    %vm40 = vweird.f32 %v35
    %v41 = vsel %vm40, %v35, %v39
    %v42 = vmul.f32 %v33, %v41
    %v43 = vmul.f32 %v34, %v41
    %44 = vst [vmem:[#allocation5] sm:$0xff] %v42
    %45 = vst [vmem:[#allocation5 + $0x8] sm:$0xff] %v43
    // Predicated region
    $region10: #{tpu_custom_call.1} parent=1 // pred_check
      _
    $region11: #{tpu_custom_call.1} parent=1 // pred_check_branch
      %47 = sbr.rel (0) target = $region13
    $region12: #{tpu_custom_call.1} parent=1 // pred_region
      %49 = vsyncadd [#allocation4], 0
      %s50 = sshll.u32 [#allocation5], 4
      %s51 = int_to_ptr.vmem [resolvable:$true] %s50
      %s52 = sshll.u32 %s1, 4
      %s53 = int_to_ptr.hbm [resolvable:$true] %s52
      %58 = dma.vmem_to_hbm [thread:$0]  %s51, 256, %s53, [#allocation4], 128, 128, 8
    $region13: #{tpu_custom_call.1} parent=1 // pred_fallthru
      _
    // Predicated region
    $region14: #{tpu_custom_call.1} parent=1 // pred_check
      _
    $region15: #{tpu_custom_call.1} parent=1 // pred_check_branch
      %60 = sbr.rel (0) target = $region17
    $region16: #{tpu_custom_call.1} parent=1 // pred_region
      %62 = dma.done [#allocation4], 256
    $region17: #{tpu_custom_call.1} parent=1 // pred_fallthru
      _
    %63 = vsyncpa [#allocation3], 1
    %64 = vsyncpa [#allocation4], 1

</llo_original>
